<compile_context>
chip_gen: v6e
topology: v6e:2x2x1
jax: 0.10.0
libtpu: 0.0.40
codegen_flags: <defaults>
</compile_context>

<pallas_src>
import functools

import jax
import jax.numpy as jnp
from jax import lax
from jax.experimental import pallas as pl
from jax.experimental.pallas import tpu as pltpu

# Small, module-consistent sizes (real module uses 50257 / 512 / 512).
VOCAB_SIZE = 1000
MAX_SEQ_LEN = 128
N_EMBD = 128


def _embeddings_kernel(ids_ref,        # (B, T) int32 token ids in SMEM (scalar prefetch)
                       tok_hbm_ref,    # (V, D) token table, left in HBM (pl.ANY)
                       pos_ref,        # (TILE_T, D) position rows, auto-pipelined VMEM tile
                       out_ref,        # (1, TILE_T, D) output tile in VMEM
                       gather_buf,     # (TILE_T, D) VMEM scratch for the row gather
                       gather_sems,    # (TILE_T,) DMA semaphores
                       *, tile_t, vocab_size):
    b = pl.program_id(0)
    t0 = pl.program_id(1) * tile_t

    # Issue all TILE_T token-row gathers; many outstanding DMAs hide HBM latency.
    def issue(r, carry):
        row = jnp.minimum(ids_ref[b, t0 + r], vocab_size - 1)  # clamp: no OOB DMA
        pltpu.make_async_copy(tok_hbm_ref.at[pl.ds(row, 1)],
                              gather_buf.at[pl.ds(r, 1)],
                              gather_sems.at[r]).start()
        return carry

    lax.fori_loop(0, tile_t, issue, 0)

    # Wait for every row gather to land.
    def wait(r, carry):
        pltpu.make_async_copy(tok_hbm_ref.at[pl.ds(0, 1)],
                              gather_buf.at[pl.ds(r, 1)],
                              gather_sems.at[r]).wait()
        return carry

    lax.fori_loop(0, tile_t, wait, 0)

    # One vectorized add + one lane/sublane-dense (TILE_T, D) store.
    out_ref[...] = (gather_buf[...] + pos_ref[...])[None, :, :]


def embeddings_forward(x, token_table, pos_table, *, tile_t=64):
    """x: (B, T) int ids -> (B, T, D) embeddings (token + position)."""
    B, T = x.shape
    V, D = token_table.shape
    S, _ = pos_table.shape
    assert T <= S, "sequence length exceeds position table"
    tile_t = min(tile_t, T)
    assert T % tile_t == 0, "T must be divisible by the row tile"

    ids = x.astype(jnp.int32)

    kernel = functools.partial(_embeddings_kernel, tile_t=tile_t, vocab_size=V)

    grid_spec = pltpu.PrefetchScalarGridSpec(
        num_scalar_prefetch=1,            # token ids land in SMEM before the grid runs
        grid=(B, T // tile_t),
        in_specs=[
            # Token table stays in HBM; gathered row-by-row with manual DMAs.
            pl.BlockSpec(memory_space=pl.ANY),
            # Position rows for this block are contiguous -> plain pipelined tile.
            pl.BlockSpec((tile_t, D), lambda b, t, ids_ref: (t, 0)),
        ],
        out_specs=pl.BlockSpec((1, tile_t, D), lambda b, t, ids_ref: (b, t, 0)),
        scratch_shapes=[
            pltpu.VMEM((tile_t, D), token_table.dtype),
            pltpu.SemaphoreType.DMA((tile_t,)),
        ],
    )

    return pl.pallas_call(
        kernel,
        out_shape=jax.ShapeDtypeStruct((B, T, D), token_table.dtype),
        grid_spec=grid_spec,
        compiler_params=pltpu.CompilerParams(
            dimension_semantics=("parallel", "parallel")),
    )(ids, token_table, pos_table)


def _reference(x, token_table, pos_table):
    tokens = jnp.take(token_table, x, axis=0)                        # (B, T, D)
    positions = jnp.take(pos_table, jnp.arange(x.shape[1]), axis=0)  # (T, D)
    return tokens + positions[None, :, :]


if __name__ == "__main__":
    key = jax.random.PRNGKey(0)
    k_tok, k_pos, k_x = jax.random.split(key, 3)

    # Deterministic "parameters" (nn.Embedding weights).
    token_table = (0.02 * jax.random.normal(k_tok, (VOCAB_SIZE, N_EMBD))
                   ).astype(jnp.float32)
    pos_table = (0.02 * jax.random.normal(k_pos, (MAX_SEQ_LEN, N_EMBD))
                 ).astype(jnp.float32)

    # Example input: batch=2, seq=128 token ids.
    B, T = 2, 128
    x = jax.random.randint(k_x, (B, T), 0, VOCAB_SIZE, dtype=jnp.int32)

    out = embeddings_forward(x, token_table, pos_table)
    out = jax.block_until_ready(out)

    ref = _reference(x, token_table, pos_table)
    assert out.shape == (B, T, N_EMBD)
    assert jnp.allclose(out, ref, atol=1e-6, rtol=1e-6)

    print("KERNEL_OK")
</pallas_src>

<mosaic_0001>
module attributes {stable_mosaic.version = 11 : i64} {
  func.func @_embeddings_kernel(%arg0: i32, %arg1: i32, %arg2: memref<2x128xi32, #tpu.memory_space<smem>>, %arg3: memref<1000x128xf32, #tpu.memory_space<any>>, %arg4: memref<64x128xf32, #tpu.memory_space<vmem>>, %arg5: memref<1x64x128xf32, #tpu.memory_space<vmem>>, %arg6: memref<64x128xf32, #tpu.memory_space<vmem>>, %arg7: memref<64x!tpu.dma_semaphore, #tpu.memory_space<semaphore_mem>>) attributes {dimension_semantics = [#tpu.dimension_semantics<parallel>, #tpu.dimension_semantics<parallel>], iteration_bounds = array<i64: 2, 2>, scalar_prefetch = 1 : i64, scratch_operands = 2 : i64, tpu.core_type = #tpu.core_type<tc>, window_params = [{}, {transform_indices = @transform_1, window_bounds = array<i64: 64, 128>}, {transform_indices = @transform_2, window_bounds = array<i64: 1, 64, 128>}]} {
    %c64_i32 = arith.constant 64 : i32
    %0 = arith.muli %arg1, %c64_i32 : i32
    %c0_i32 = arith.constant 0 : i32
    %c64_i32_0 = arith.constant 64 : i32
    %1 = arith.addi %c0_i32, %c64_i32_0 : i32
    %c1_i32 = arith.constant 1 : i32
    scf.for %arg8 = %c0_i32 to %1 step %c1_i32  : i32 {
      %8 = arith.addi %0, %arg8 : i32
      %9 = arith.index_cast %arg0 : i32 to index
      %10 = arith.index_cast %8 : i32 to index
      %11 = memref.load %arg2[%9, %10] : memref<2x128xi32, #tpu.memory_space<smem>>
      %c999_i32 = arith.constant 999 : i32
      %12 = arith.minsi %11, %c999_i32 : i32
      %c0_i32_12 = arith.constant 0 : i32
      %13 = tpu.memref_slice %arg3[%12, %c0_i32_12] : memref<1000x128xf32, #tpu.memory_space<any>> -> memref<1x128xf32, #tpu.memory_space<any>>
      %c0_i32_13 = arith.constant 0 : i32
      %14 = tpu.memref_slice %arg6[%arg8, %c0_i32_13] : memref<64x128xf32, #tpu.memory_space<vmem>> -> memref<1x128xf32, #tpu.memory_space<vmem>>
      %15 = tpu.memref_slice %arg7[%arg8] : memref<64x!tpu.dma_semaphore, #tpu.memory_space<semaphore_mem>> -> memref<1x!tpu.dma_semaphore, #tpu.memory_space<semaphore_mem>>
      %16 = tpu.memref_squeeze %15 : memref<1x!tpu.dma_semaphore, #tpu.memory_space<semaphore_mem>> -> memref<!tpu.dma_semaphore, #tpu.memory_space<semaphore_mem>>
      tpu.enqueue_dma source(%13 : memref<1x128xf32, #tpu.memory_space<any>>) target(%14 : memref<1x128xf32, #tpu.memory_space<vmem>>) target_semaphore(%16 : memref<!tpu.dma_semaphore, #tpu.memory_space<semaphore_mem>>)
    }
    %c64_i32_1 = arith.constant 64 : i32
    %c0_i32_2 = arith.constant 0 : i32
    %c64_i32_3 = arith.constant 64 : i32
    %2 = arith.addi %c0_i32_2, %c64_i32_3 : i32
    %c1_i32_4 = arith.constant 1 : i32
    scf.for %arg8 = %c0_i32_2 to %2 step %c1_i32_4  : i32 {
      %c0_i32_12 = arith.constant 0 : i32
      %c0_i32_13 = arith.constant 0 : i32
      %8 = tpu.memref_slice %arg3[%c0_i32_12, %c0_i32_13] : memref<1000x128xf32, #tpu.memory_space<any>> -> memref<1x128xf32, #tpu.memory_space<any>>
      %c0_i32_14 = arith.constant 0 : i32
      %9 = tpu.memref_slice %arg6[%arg8, %c0_i32_14] : memref<64x128xf32, #tpu.memory_space<vmem>> -> memref<1x128xf32, #tpu.memory_space<vmem>>
      %10 = tpu.memref_slice %arg7[%arg8] : memref<64x!tpu.dma_semaphore, #tpu.memory_space<semaphore_mem>> -> memref<1x!tpu.dma_semaphore, #tpu.memory_space<semaphore_mem>>
      %11 = tpu.memref_squeeze %10 : memref<1x!tpu.dma_semaphore, #tpu.memory_space<semaphore_mem>> -> memref<!tpu.dma_semaphore, #tpu.memory_space<semaphore_mem>>
      tpu.wait_dma2 semaphore(%11 : memref<!tpu.dma_semaphore, #tpu.memory_space<semaphore_mem>>) src(%8 : memref<1x128xf32, #tpu.memory_space<any>>) dst(%9 : memref<1x128xf32, #tpu.memory_space<vmem>>)
    }
    %c64_i32_5 = arith.constant 64 : i32
    %c0 = arith.constant 0 : index
    %c0_6 = arith.constant 0 : index
    %3 = vector.load %arg6[%c0, %c0_6] : memref<64x128xf32, #tpu.memory_space<vmem>>, vector<64x128xf32>
    %c0_7 = arith.constant 0 : index
    %c0_8 = arith.constant 0 : index
    %4 = vector.load %arg4[%c0_7, %c0_8] : memref<64x128xf32, #tpu.memory_space<vmem>>, vector<64x128xf32>
    %5 = arith.addf %3, %4 : vector<64x128xf32>
    %6 = vector.shape_cast %5 : vector<64x128xf32> to vector<1x64x128xf32>
    %c0_9 = arith.constant 0 : index
    %c0_10 = arith.constant 0 : index
    %c0_11 = arith.constant 0 : index
    %7 = vector.load %arg5[%c0_9, %c0_10, %c0_11] : memref<1x64x128xf32, #tpu.memory_space<vmem>>, vector<1x64x128xf32>
    tpu.vector_store %arg5[%c0_9, %c0_10, %c0_11], %6 {strides = array<i32>} : memref<1x64x128xf32, #tpu.memory_space<vmem>>, vector<1x64x128xf32>,
    return
  }
  func.func @transform_1(%arg0: i32, %arg1: i32, %arg2: memref<2x128xi32, #tpu.memory_space<smem>>) -> (i32, i32) {
    %c0_i32 = arith.constant 0 : i32
    %c0_i32_0 = arith.constant 0 : i32
    return %arg1, %c0_i32 : i32, i32
  }
  func.func @transform_2(%arg0: i32, %arg1: i32, %arg2: memref<2x128xi32, #tpu.memory_space<smem>>) -> (i32, i32, i32) {
    %c0_i32 = arith.constant 0 : i32
    %c0_i32_0 = arith.constant 0 : i32
    return %arg0, %arg1, %c0_i32 : i32, i32, i32
  }
}

</mosaic_0001>

<llo_original>
// kernel: tpu_custom_call.1
$region0: #{tpu_custom_call.1}
  #allocation0 [shape = 'u32[]', space=smem, size = 0x4, offset = 0x4, fixed_abs, tag = 'smem constant byte address 0x4 - core index']
  #allocation1 [shape = 'u32[144,128]{1,0:T(1,128)}', space=vmem, size = 0x12000, scoped, tag = 'internal scratch']
  #allocation2 [shape = 'f32[64,128]{1,0:T(8,128)}', space=vmem, size = 0x8000, scoped, tag = 'scratch operand']
  #allocation3 [shape = 's32[64]{0}', space=sflag, size = 0x100, scoped, tag = 'scratch operand']
  #allocation4 [shape = 's32[1]{0}', space=sflag, size = 0x4, scoped, tag = 'scoped memory for tpu_custom_call.1']
  #allocation5 [shape = 'u8[1024]{0}', space=smem, size = 0x400, scoped, tag = 'prefetched SMEM operand 0']
  #allocation10 [shape = 's32[]', space=sflag, size = 0x4, offset = 0, fixed_abs, tag = 'sflag constant byte address 0x0 - dummy sync flag']
  #allocation11 [shape = 's32[]', space=sflag, size = 0x4, offset = 0, fixed_abs, tag = 'sflag constant byte address 0x0 - dummy sync flag']
  #allocation12 [shape = 'u32[]', space=smem, size = 0x4, offset = 0x44, fixed_abs, tag = 'smem constant byte address 0x44 - assertion arg 0']
  #allocation13 [shape = 'u32[]', space=smem, size = 0x4, offset = 0x48, fixed_abs, tag = 'smem constant byte address 0x48 - assertion arg 1']
  %s0 = inlined_call_operand.hbm [shape: s32[2,128], index: 0, kind: input, shape index: {}]
  %s1 = inlined_call_operand.hbm [shape: f32[1000,128], index: 1, kind: input, shape index: {}]
  %s2 = inlined_call_operand.hbm [shape: f32[128,128], index: 2, kind: input, shape index: {}]
  %s3 = inlined_call_operand.hbm [shape: f32[2,128,128], index: 3, kind: output, shape index: {}]
  %s4 = sld [smem:[#allocation0]]
  $region59: #{tpu_custom_call.1} parent=0
    _
  %s6 = ssub.s32 1, %s4
  %s7 = scalar_select 0, %s6, %s4
  %9 = dma.hbm_to_smem %s0, 32, [#allocation5], [#allocation4]
  %10 = dma.done [#allocation4], 32
  %11 = sfence
  $region1: #{tpu_custom_call.1} parent=0
    #allocation6 [shape = 'u8[65536]{0}', space=vmem, size = 0x10000, scoped, tag = 'input window, operand 2']
    #allocation7 [shape = 's32[2]{0}', space=sflag, size = 0x8, scoped, tag = 'scoped memory for tpu_custom_call.1']
    #allocation8 [shape = 's32[2]{0}', space=sflag, size = 0x8, scoped, tag = 'scoped memory for tpu_custom_call.1']
    #allocation9 [shape = 'u8[65536]{0}', space=vmem, size = 0x10000, scoped, tag = 'output window, operand 0']
    %12 = vsyncpa [#allocation7], 0
    %s13 = scalar_lea.sflag [#allocation7], 1
    %14 = vsyncpa %s13, 0
    %15 = vsyncpa [#allocation8], 0
    %s16 = scalar_lea.sflag [#allocation8], 1
    %17 = vsyncpa %s16, 0
    loop: start=0, step=1, limit=6
    $region2: #{tpu_custom_call.1} parent=1 // loop_pre_header
      _
    $region3: #{tpu_custom_call.1} parent=1 // loop_header
      %s19 = sphi 0, %s23
      %p20 = scmp.ge.s32.totalorder %s19, 6
      %s26 = sphi 0, %s38
      %s27 = sphi 0, %s34
      %s28 = sphi 0, %s26
      %s29 = sphi 0, %s27
      %s30 = sphi 0, %s28
      %s31 = sphi 0, %s29
      %s41 = sphi 0, %s43
      %s44 = sphi 0, %s41
      %s45 = sphi 0, %s44
      %s61 = sphi 0, %s45
      %s69 = sphi 0, %s71
      %s72 = sphi 0, %s69
      %s73 = sphi 0, %s72
      %s89 = sphi 0, %s73
    $region4: #{tpu_custom_call.1} parent=1 // loop_header_branch
      %22 = sbr.rel (%p20) target = $region8
    $region5: #{tpu_custom_call.1} parent=1 // loop_body
      %s24 = ssub.s32 %s19, 1
      %s25 = ssub.s32 %s19, 2
      %s32 = sadd.s32 1, %s27
      %p33 = scmp.ge.s32.totalorder %s32, 2
      %s34 = scalar_select %p33, 0, %s32
      %s35 = sadd.s32 1, %s26
      %s36 = scalar_select %p33, %s35, %s26
      %p37 = scmp.ge.s32.totalorder %s36, 2
      %s38 = scalar_select %p37, 0, %s36
      %s39 = ssub.s32 %s27, %s34
      %p40 = scmp.eq.s32.totalorder %s39, 0
      %s42 = sadd.s32 %s41, 1
      %s43 = scalar_select %p40, %s41, %s42
      %p46 = pneg %p40
      %p47 = scmp.eq.s32.totalorder %s19, 3
      %p48 = por %p46, %p47
      %p49 = scmp.ne.s32.totalorder %s41, %s44
      %p50 = scmp.eq.s32.totalorder %s19, 0
      %p51 = por %p49, %p50
      %p52 = scmp.ne.s32.totalorder %s41, %s44
      %p53 = scmp.eq.s32.totalorder %s24, 3
      %p54 = por %p52, %p53
      %p55 = scmp.ne.s32.totalorder %s44, %s45
      %p56 = scmp.eq.s32.totalorder %s24, 0
      %p57 = por %p55, %p56
      %p58 = scmp.ne.s32.totalorder %s44, %s45
      %p59 = scmp.eq.s32.totalorder %s25, 3
      %p60 = por %p58, %p59
      %p62 = scmp.ne.s32.totalorder %s45, %s61
      %p63 = scmp.eq.s32.totalorder %s25, 0
      %p64 = por %p62, %p63
      %s65 = ssub.s32 %s26, %s38
      %s66 = ssub.s32 %s27, %s34
      %s67 = sor.u32 %s65, %s66
      %p68 = scmp.eq.s32.totalorder %s67, 0
      %s70 = sadd.s32 %s69, 1
      %s71 = scalar_select %p68, %s69, %s70
      %p74 = pneg %p68
      %p75 = scmp.eq.s32.totalorder %s19, 3
      %p76 = por %p74, %p75
      %p77 = scmp.ne.s32.totalorder %s69, %s72
      %p78 = scmp.eq.s32.totalorder %s19, 0
      %p79 = por %p77, %p78
      %p80 = scmp.ne.s32.totalorder %s69, %s72
      %p81 = scmp.eq.s32.totalorder %s24, 3
      %p82 = por %p80, %p81
      %p83 = scmp.ne.s32.totalorder %s72, %s73
      %p84 = scmp.eq.s32.totalorder %s24, 0
      %p85 = por %p83, %p84
      %p86 = scmp.ne.s32.totalorder %s72, %s73
      %p87 = scmp.eq.s32.totalorder %s25, 3
      %p88 = por %p86, %p87
      %p90 = scmp.ne.s32.totalorder %s73, %s89
      %p91 = scmp.eq.s32.totalorder %s25, 0
      %p92 = por %p90, %p91
      %p93 = scmp.le.s32.totalorder 1, %s19
      %p94 = scmp.lt.s32.totalorder %s19, 5
      %p95 = pnand %p93, %p94
      %p96 = pneg %p95
      // Predicated region
      $region9: #{tpu_custom_call.1} parent=5 // pred_check
        _
      $region10: #{tpu_custom_call.1} parent=5 // pred_check_branch
        %98 = sbr.rel (%p95) target = $region12
      $region11: #{tpu_custom_call.1} parent=5 // pred_region
        %s99 = ssub.s32 %s19, 1
      $region12: #{tpu_custom_call.1} parent=5 // pred_fallthru
        _
      %p100 = scmp.lt.s32.totalorder %s19, 4
      // Predicated region
      $region13: #{tpu_custom_call.1} parent=5 // pred_check
        %p101 = pneg %p100
      $region14: #{tpu_custom_call.1} parent=5 // pred_check_branch
        %103 = sbr.rel (%p101) target = $region16
      $region15: #{tpu_custom_call.1} parent=5 // pred_region
        // Predicated region
        $region17: #{tpu_custom_call.1} parent=15 // pred_check
          %p104 = pneg %p51
        $region18: #{tpu_custom_call.1} parent=15 // pred_check_branch
          %106 = sbr.rel (%p104) target = $region20
        $region19: #{tpu_custom_call.1} parent=15 // pred_region
          %s107 = sand.u32 %s41, 1
          %s108 = scalar_lea.sflag [#allocation7], %s107
          %s109 = sand.u32 %s41, 1
          %s110 = smul.addr %s109, 64
          %s111 = scalar_lea.vmem [#allocation6], %s110
          %s112 = smul.u32 8, %s27
          %s114 = ssub.s32 1024, 1024
          %115 = vsyncadd %s108, %s114
          %s116 = smul.addr %s112, 128
          %s117 = scalar_lea.hbm %s2, %s116
          %s118 = sshll.u32 %s111, 4
          %s119 = int_to_ptr.vmem [resolvable:$true] %s118
          %124 = dma.hbm_to_vmem [thread:$0]  %s117, 1024, %s119, %s108, 128, 128, 8
        $region20: #{tpu_custom_call.1} parent=15 // pred_fallthru
          _
      $region16: #{tpu_custom_call.1} parent=5 // pred_fallthru
        _
      %p125 = scmp.le.s32.totalorder 1, %s19
      %p126 = scmp.lt.s32.totalorder %s19, 5
      %p127 = pnand %p125, %p126
      %p128 = pneg %p127
      // Predicated region
      $region21: #{tpu_custom_call.1} parent=5 // pred_check
        _
      $region22: #{tpu_custom_call.1} parent=5 // pred_check_branch
        %130 = sbr.rel (%p127) target = $region24
      $region23: #{tpu_custom_call.1} parent=5 // pred_region
        %s131 = ssub.s32 %s19, 1
        %s132 = sand.u32 %s44, 1
        %s133 = scalar_lea.sflag [#allocation7], %s132
        %s134 = sand.u32 %s44, 1
        %s135 = smul.addr %s134, 64
        %s136 = scalar_lea.vmem [#allocation6], %s135
        // Predicated region
        $region25: #{tpu_custom_call.1} parent=23 // pred_check
          %p137 = pneg %p57
        $region26: #{tpu_custom_call.1} parent=23 // pred_check_branch
          %139 = sbr.rel (%p137) target = $region28
        $region27: #{tpu_custom_call.1} parent=23 // pred_region
          %140 = dma.done %s133, 1024
        $region28: #{tpu_custom_call.1} parent=23 // pred_fallthru
          _
        %s141 = sand.u32 %s44, 1
        %s142 = scalar_lea.sflag [#allocation7], %s141
        %s143 = sand.u32 %s44, 1
        %s144 = smul.addr %s143, 64
        %s145 = scalar_lea.vmem [#allocation6], %s144
        %p146 = pneg %p57
        %p147 = pneg %p54
        %p148 = pneg %p85
        %p149 = pneg %p82
        %s150 = sand.u32 %s72, 1
        %s151 = scalar_lea.sflag [#allocation8], %s150
        %s152 = sand.u32 %s72, 1
        %s153 = smul.addr %s152, 64
        %s154 = scalar_lea.vmem [#allocation9], %s153
        %s155 = smul.u32 8, %s29
        %s156 = smul.u32 8, %s29
        %s157 = smul.u32 %s29, 64
        loop: start=0, step=1, limit=64
        $region29: #{tpu_custom_call.1} parent=23 // loop_pre_header
          _
        $region30: #{tpu_custom_call.1} parent=23 // loop_header
          %s159 = sphi 0, %s163
          %p160 = scmp.ge.s32.totalorder %s159, 64
        $region31: #{tpu_custom_call.1} parent=23 // loop_header_branch
          %162 = sbr.rel (%p160) target = $region35
        $region32: #{tpu_custom_call.1} parent=23 // loop_body
          %s164 = sadd.s32 %s157, %s159
          %s165 = sshra.s32 %s164, 7
          %s166 = sand.u32 %s164, 127
          %s167 = sadd.s32 %s165, %s28
          %s168 = smul.u32 %s167, 128
          %s169 = sshra.s32 %s164, 7
          %s170 = sand.u32 %s164, 127
          %s171 = sadd.s32 %s168, %s170
          %s172 = sld [smem:[#allocation5 + %s171]]
          %p173 = scmp.lt.s32.totalorder %s172, 999
          %s174 = scalar_select %p173, %s172, 999
          %s175 = smul.addr %s174, 16
          %s176 = scalar_lea.hbm %s1, %s175
          %s177 = scalar_lea.vmem [#allocation2], %s159
          %s178 = scalar_lea.sflag [#allocation3], %s159
          // Predicated region
          $region36: #{tpu_custom_call.1} parent=32 // pred_check
            _
          $region37: #{tpu_custom_call.1} parent=32 // pred_check_branch
            %180 = sbr.rel target = $region39
          $region38: #{tpu_custom_call.1} parent=32 // pred_region
            %181 = sst [smem:[#allocation12]] [#allocation11]
            %182 = sst [smem:[#allocation13]] [#allocation10]
          $region39: #{tpu_custom_call.1} parent=32 // pred_fallthru
            _
          %184 = shalt.err (0)
          %s186 = sshll.u32 %s177, 4
          %s187 = int_to_ptr.vmem [resolvable:$true] %s186
          %189 = dma.hbm_to_vmem [thread:$0]  %s176, 16, %s187, %s178
        $region33: #{tpu_custom_call.1} parent=23 // loop_footer
          %s163 = sadd.s32 1, %s159
        $region34: #{tpu_custom_call.1} parent=23 // loop_footer_branch
          %158 = sbr.rel target = $region30
        $region35: #{tpu_custom_call.1} parent=23 // loop_exit
          _
        loop: start=0, step=1, limit=64
        $region40: #{tpu_custom_call.1} parent=23 // loop_pre_header
          _
        $region41: #{tpu_custom_call.1} parent=23 // loop_header
          %s191 = sphi 0, %s195
          %p192 = scmp.ge.s32.totalorder %s191, 64
        $region42: #{tpu_custom_call.1} parent=23 // loop_header_branch
          %194 = sbr.rel (%p192) target = $region46
        $region43: #{tpu_custom_call.1} parent=23 // loop_body
          %s196 = scalar_lea.sflag [#allocation3], %s191
          %s197 = smul.u32 1, 1
          %s198 = sshll.u32 %s197, 4
          %199 = dma.done %s196, %s198
        $region44: #{tpu_custom_call.1} parent=23 // loop_footer
          %s195 = sadd.s32 1, %s191
        $region45: #{tpu_custom_call.1} parent=23 // loop_footer_branch
          %190 = sbr.rel target = $region41
        $region46: #{tpu_custom_call.1} parent=23 // loop_exit
          _
        %v200 = vld [vmem:[#allocation2] sm:$0xff]
        %v201 = vld [vmem:[#allocation2 + $0x8] sm:$0xff]
        %v202 = vld [vmem:[#allocation2 + $0x10] sm:$0xff]
        %v203 = vld [vmem:[#allocation2 + $0x18] sm:$0xff]
        %v204 = vld [vmem:[#allocation2 + $0x20] sm:$0xff]
        %v205 = vld [vmem:[#allocation2 + $0x28] sm:$0xff]
        %v206 = vld [vmem:[#allocation2 + $0x30] sm:$0xff]
        %v207 = vld [vmem:[#allocation2 + $0x38] sm:$0xff]
        %v208 = vld [vmem:[%s136] sm:$0xff]
        %v209 = vld [vmem:[%s136 + $0x8] sm:$0xff]
        %v210 = vld [vmem:[%s136 + $0x10] sm:$0xff]
        %v211 = vld [vmem:[%s136 + $0x18] sm:$0xff]
        %v212 = vld [vmem:[%s136 + $0x20] sm:$0xff]
        %v213 = vld [vmem:[%s136 + $0x28] sm:$0xff]
        %v214 = vld [vmem:[%s136 + $0x30] sm:$0xff]
        %v215 = vld [vmem:[%s136 + $0x38] sm:$0xff]
        %v216 = vadd.f32 %v200, %v208
        %v217 = vadd.f32 %v201, %v209
        %v218 = vadd.f32 %v202, %v210
        %v219 = vadd.f32 %v203, %v211
        %v220 = vadd.f32 %v204, %v212
        %v221 = vadd.f32 %v205, %v213
        %v222 = vadd.f32 %v206, %v214
        %v223 = vadd.f32 %v207, %v215
        %224 = vst [vmem:[%s154] sm:$0xff] %v216
        %225 = vst [vmem:[%s154 + $0x8] sm:$0xff] %v217
        %226 = vst [vmem:[%s154 + $0x10] sm:$0xff] %v218
        %227 = vst [vmem:[%s154 + $0x18] sm:$0xff] %v219
        %228 = vst [vmem:[%s154 + $0x20] sm:$0xff] %v220
        %229 = vst [vmem:[%s154 + $0x28] sm:$0xff] %v221
        %230 = vst [vmem:[%s154 + $0x30] sm:$0xff] %v222
        %231 = vst [vmem:[%s154 + $0x38] sm:$0xff] %v223
        %s232 = sand.u32 %s72, 1
        %s233 = scalar_lea.sflag [#allocation8], %s232
        %s234 = sand.u32 %s72, 1
        %s235 = smul.addr %s234, 64
        %s236 = scalar_lea.vmem [#allocation9], %s235
        // Predicated region
        $region47: #{tpu_custom_call.1} parent=23 // pred_check
          %p237 = pneg %p82
        $region48: #{tpu_custom_call.1} parent=23 // pred_check_branch
          %239 = sbr.rel (%p237) target = $region50
        $region49: #{tpu_custom_call.1} parent=23 // pred_region
          %s240 = smul.u32 8, %s29
          %s242 = ssub.s32 1024, 1024
          %243 = vsyncadd %s233, %s242
          %s244 = smul.addr %s28, 16
          %s245 = sadd.s32 %s240, %s244
          %s246 = smul.addr %s245, 128
          %s247 = scalar_lea.hbm %s3, %s246
          %s248 = sshll.u32 %s236, 4
          %s249 = int_to_ptr.vmem [resolvable:$true] %s248
          %254 = dma.vmem_to_hbm [thread:$0]  %s249, 1024, %s247, %s233, 128, 128, 8
        $region50: #{tpu_custom_call.1} parent=23 // pred_fallthru
          _
      $region24: #{tpu_custom_call.1} parent=5 // pred_fallthru
        _
      %p255 = scmp.le.s32.totalorder 2, %s19
      // Predicated region
      $region51: #{tpu_custom_call.1} parent=5 // pred_check
        %p256 = pneg %p255
      $region52: #{tpu_custom_call.1} parent=5 // pred_check_branch
        %258 = sbr.rel (%p256) target = $region54
      $region53: #{tpu_custom_call.1} parent=5 // pred_region
        %s259 = ssub.s32 %s19, 2
        // Predicated region
        $region55: #{tpu_custom_call.1} parent=53 // pred_check
          %p260 = pneg %p88
        $region56: #{tpu_custom_call.1} parent=53 // pred_check_branch
          %262 = sbr.rel (%p260) target = $region58
        $region57: #{tpu_custom_call.1} parent=53 // pred_region
          %s263 = sand.u32 %s73, 1
          %s264 = scalar_lea.sflag [#allocation8], %s263
          %s265 = sand.u32 %s73, 1
          %s266 = smul.addr %s265, 64
          %s267 = scalar_lea.vmem [#allocation9], %s266
          %268 = dma.done %s264, 1024
        $region58: #{tpu_custom_call.1} parent=53 // pred_fallthru
          _
      $region54: #{tpu_custom_call.1} parent=5 // pred_fallthru
        _
    $region6: #{tpu_custom_call.1} parent=1 // loop_footer
      %s23 = sadd.s32 1, %s19
    $region7: #{tpu_custom_call.1} parent=1 // loop_footer_branch
      %18 = sbr.rel target = $region3
    $region8: #{tpu_custom_call.1} parent=1 // loop_exit
      _
    %269 = vsyncpa [#allocation7], 1
    %s270 = scalar_lea.sflag [#allocation7], 1
    %271 = vsyncpa %s270, 1
    %272 = vsyncpa [#allocation8], 1
    %s273 = scalar_lea.sflag [#allocation8], 1
    %274 = vsyncpa %s273, 1
  %275 = vsyncmov [#allocation3]
  %s276 = vpop.sfrf %275
  %p277 = scmp.eq.s32.totalorder %s276, 0
  %p278 = pneg %p277
  %280 = shalt.err (%p278)
  %s281 = scalar_lea.sflag [#allocation3], 1
  %282 = vsyncmov %s281
  %s283 = vpop.sfrf %282
  %p284 = scmp.eq.s32.totalorder %s283, 0
  %p285 = pneg %p284
  %287 = shalt.err (%p285)
  %s288 = scalar_lea.sflag [#allocation3], 2
  %289 = vsyncmov %s288
  %s290 = vpop.sfrf %289
  %p291 = scmp.eq.s32.totalorder %s290, 0
  %p292 = pneg %p291
  %294 = shalt.err (%p292)
  %s295 = scalar_lea.sflag [#allocation3], 3
  %296 = vsyncmov %s295
  %s297 = vpop.sfrf %296
  %p298 = scmp.eq.s32.totalorder %s297, 0
  %p299 = pneg %p298
  %301 = shalt.err (%p299)
  %s302 = scalar_lea.sflag [#allocation3], 4
  %303 = vsyncmov %s302
  %s304 = vpop.sfrf %303
  %p305 = scmp.eq.s32.totalorder %s304, 0
  %p306 = pneg %p305
  %308 = shalt.err (%p306)
  %s309 = scalar_lea.sflag [#allocation3], 5
  %310 = vsyncmov %s309
  %s311 = vpop.sfrf %310
  %p312 = scmp.eq.s32.totalorder %s311, 0
  %p313 = pneg %p312
  %315 = shalt.err (%p313)
  %s316 = scalar_lea.sflag [#allocation3], 6
  %317 = vsyncmov %s316
  %s318 = vpop.sfrf %317
  %p319 = scmp.eq.s32.totalorder %s318, 0
  %p320 = pneg %p319
  %322 = shalt.err (%p320)
  %s323 = scalar_lea.sflag [#allocation3], 7
  %324 = vsyncmov %s323
  %s325 = vpop.sfrf %324
  %p326 = scmp.eq.s32.totalorder %s325, 0
  %p327 = pneg %p326
  %329 = shalt.err (%p327)
  %s330 = scalar_lea.sflag [#allocation3], 8
  %331 = vsyncmov %s330
  %s332 = vpop.sfrf %331
  %p333 = scmp.eq.s32.totalorder %s332, 0
  %p334 = pneg %p333
  %336 = shalt.err (%p334)
  %s337 = scalar_lea.sflag [#allocation3], 9
  %338 = vsyncmov %s337
  %s339 = vpop.sfrf %338
  %p340 = scmp.eq.s32.totalorder %s339, 0
  %p341 = pneg %p340
  %343 = shalt.err (%p341)
  %s344 = scalar_lea.sflag [#allocation3], 10
  %345 = vsyncmov %s344
  %s346 = vpop.sfrf %345
  %p347 = scmp.eq.s32.totalorder %s346, 0
  %p348 = pneg %p347
  %350 = shalt.err (%p348)
  %s351 = scalar_lea.sflag [#allocation3], 11
  %352 = vsyncmov %s351
  %s353 = vpop.sfrf %352
  %p354 = scmp.eq.s32.totalorder %s353, 0
  %p355 = pneg %p354
  %357 = shalt.err (%p355)
  %s358 = scalar_lea.sflag [#allocation3], 12
  %359 = vsyncmov %s358
  %s360 = vpop.sfrf %359
  %p361 = scmp.eq.s32.totalorder %s360, 0
  %p362 = pneg %p361
  %364 = shalt.err (%p362)
  %s365 = scalar_lea.sflag [#allocation3], 13
  %366 = vsyncmov %s365
  %s367 = vpop.sfrf %366
  %p368 = scmp.eq.s32.totalorder %s367, 0
  %p369 = pneg %p368
  %371 = shalt.err (%p369)
  %s372 = scalar_lea.sflag [#allocation3], 14
  %373 = vsyncmov %s372
  %s374 = vpop.sfrf %373
  %p375 = scmp.eq.s32.totalorder %s374, 0
  %p376 = pneg %p375
  %378 = shalt.err (%p376)
  %s379 = scalar_lea.sflag [#allocation3], 15
  %380 = vsyncmov %s379
  %s381 = vpop.sfrf %380
  %p382 = scmp.eq.s32.totalorder %s381, 0
  %p383 = pneg %p382
  %385 = shalt.err (%p383)
  %s386 = scalar_lea.sflag [#allocation3], 16
  %387 = vsyncmov %s386
  %s388 = vpop.sfrf %387
  %p389 = scmp.eq.s32.totalorder %s388, 0
  %p390 = pneg %p389
  %392 = shalt.err (%p390)
  %s393 = scalar_lea.sflag [#allocation3], 17
  %394 = vsyncmov %s393
  %s395 = vpop.sfrf %394
  %p396 = scmp.eq.s32.totalorder %s395, 0
  %p397 = pneg %p396
  %399 = shalt.err (%p397)
  %s400 = scalar_lea.sflag [#allocation3], 18
  %401 = vsyncmov %s400
  %s402 = vpop.sfrf %401
  %p403 = scmp.eq.s32.totalorder %s402, 0
  %p404 = pneg %p403
  %406 = shalt.err (%p404)
  %s407 = scalar_lea.sflag [#allocation3], 19
  %408 = vsyncmov %s407
  %s409 = vpop.sfrf %408
  %p410 = scmp.eq.s32.totalorder %s409, 0
  %p411 = pneg %p410
  %413 = shalt.err (%p411)
  %s414 = scalar_lea.sflag [#allocation3], 20
  %415 = vsyncmov %s414
  %s416 = vpop.sfrf %415
  %p417 = scmp.eq.s32.totalorder %s416, 0
  %p418 = pneg %p417
  %420 = shalt.err (%p418)
  %s421 = scalar_lea.sflag [#allocation3], 21
  %422 = vsyncmov %s421
  %s423 = vpop.sfrf %422
  %p424 = scmp.eq.s32.totalorder %s423, 0
  %p425 = pneg %p424
  %427 = shalt.err (%p425)
  %s428 = scalar_lea.sflag [#allocation3], 22
  %429 = vsyncmov %s428
  %s430 = vpop.sfrf %429
  %p431 = scmp.eq.s32.totalorder %s430, 0
  %p432 = pneg %p431
  %434 = shalt.err (%p432)
  %s435 = scalar_lea.sflag [#allocation3], 23
  %436 = vsyncmov %s435
  %s437 = vpop.sfrf %436
  %p438 = scmp.eq.s32.totalorder %s437, 0
  %p439 = pneg %p438
  %441 = shalt.err (%p439)
  %s442 = scalar_lea.sflag [#allocation3], 24
  %443 = vsyncmov %s442
  %s444 = vpop.sfrf %443
  %p445 = scmp.eq.s32.totalorder %s444, 0
  %p446 = pneg %p445
  %448 = shalt.err (%p446)
  %s449 = scalar_lea.sflag [#allocation3], 25
  %450 = vsyncmov %s449
  %s451 = vpop.sfrf %450
  %p452 = scmp.eq.s32.totalorder %s451, 0
  %p453 = pneg %p452
  %455 = shalt.err (%p453)
  %s456 = scalar_lea.sflag [#allocation3], 26
  %457 = vsyncmov %s456
  %s458 = vpop.sfrf %457
  %p459 = scmp.eq.s32.totalorder %s458, 0
  %p460 = pneg %p459
  %462 = shalt.err (%p460)
  %s463 = scalar_lea.sflag [#allocation3], 27
  %464 = vsyncmov %s463
  %s465 = vpop.sfrf %464
  %p466 = scmp.eq.s32.totalorder %s465, 0
  %p467 = pneg %p466
  %469 = shalt.err (%p467)
  %s470 = scalar_lea.sflag [#allocation3], 28
  %471 = vsyncmov %s470
  %s472 = vpop.sfrf %471
  %p473 = scmp.eq.s32.totalorder %s472, 0
  %p474 = pneg %p473
  %476 = shalt.err (%p474)
  %s477 = scalar_lea.sflag [#allocation3], 29
  %478 = vsyncmov %s477
  %s479 = vpop.sfrf %478
  %p480 = scmp.eq.s32.totalorder %s479, 0
  %p481 = pneg %p480
  %483 = shalt.err (%p481)
  %s484 = scalar_lea.sflag [#allocation3], 30
  %485 = vsyncmov %s484
  %s486 = vpop.sfrf %485
  %p487 = scmp.eq.s32.totalorder %s486, 0
  %p488 = pneg %p487
  %490 = shalt.err (%p488)
  %s491 = scalar_lea.sflag [#allocation3], 31
  %492 = vsyncmov %s491
  %s493 = vpop.sfrf %492
  %p494 = scmp.eq.s32.totalorder %s493, 0
  %p495 = pneg %p494
  %497 = shalt.err (%p495)
  %s498 = scalar_lea.sflag [#allocation3], 32
  %499 = vsyncmov %s498
  %s500 = vpop.sfrf %499
  %p501 = scmp.eq.s32.totalorder %s500, 0
  %p502 = pneg %p501
  %504 = shalt.err (%p502)
  %s505 = scalar_lea.sflag [#allocation3], 33
  %506 = vsyncmov %s505
  %s507 = vpop.sfrf %506
  %p508 = scmp.eq.s32.totalorder %s507, 0
  %p509 = pneg %p508
  %511 = shalt.err (%p509)
  %s512 = scalar_lea.sflag [#allocation3], 34
  %513 = vsyncmov %s512
  %s514 = vpop.sfrf %513
  %p515 = scmp.eq.s32.totalorder %s514, 0
  %p516 = pneg %p515
  %518 = shalt.err (%p516)
  %s519 = scalar_lea.sflag [#allocation3], 35
  %520 = vsyncmov %s519
  %s521 = vpop.sfrf %520
  %p522 = scmp.eq.s32.totalorder %s521, 0
  %p523 = pneg %p522
  %525 = shalt.err (%p523)
  %s526 = scalar_lea.sflag [#allocation3], 36
  %527 = vsyncmov %s526
  %s528 = vpop.sfrf %527
  %p529 = scmp.eq.s32.totalorder %s528, 0
  %p530 = pneg %p529
  %532 = shalt.err (%p530)
  %s533 = scalar_lea.sflag [#allocation3], 37
  %534 = vsyncmov %s533
  %s535 = vpop.sfrf %534
  %p536 = scmp.eq.s32.totalorder %s535, 0
  %p537 = pneg %p536
  %539 = shalt.err (%p537)
  %s540 = scalar_lea.sflag [#allocation3], 38
  %541 = vsyncmov %s540
  %s542 = vpop.sfrf %541
  %p543 = scmp.eq.s32.totalorder %s542, 0
  %p544 = pneg %p543
  %546 = shalt.err (%p544)
  %s547 = scalar_lea.sflag [#allocation3], 39
  %548 = vsyncmov %s547
  %s549 = vpop.sfrf %548
  %p550 = scmp.eq.s32.totalorder %s549, 0
  %p551 = pneg %p550
  %553 = shalt.err (%p551)
  %s554 = scalar_lea.sflag [#allocation3], 40
  %555 = vsyncmov %s554
  %s556 = vpop.sfrf %555
  %p557 = scmp.eq.s32.totalorder %s556, 0
  %p558 = pneg %p557
  %560 = shalt.err (%p558)
  %s561 = scalar_lea.sflag [#allocation3], 41
  %562 = vsyncmov %s561
  %s563 = vpop.sfrf %562
  %p564 = scmp.eq.s32.totalorder %s563, 0
  %p565 = pneg %p564
  %567 = shalt.err (%p565)
  %s568 = scalar_lea.sflag [#allocation3], 42
  %569 = vsyncmov %s568
  %s570 = vpop.sfrf %569
  %p571 = scmp.eq.s32.totalorder %s570, 0
  %p572 = pneg %p571
  %574 = shalt.err (%p572)
  %s575 = scalar_lea.sflag [#allocation3], 43
  %576 = vsyncmov %s575
  %s577 = vpop.sfrf %576
  %p578 = scmp.eq.s32.totalorder %s577, 0
  %p579 = pneg %p578
  %581 = shalt.err (%p579)
  %s582 = scalar_lea.sflag [#allocation3], 44
  %583 = vsyncmov %s582
  %s584 = vpop.sfrf %583
  %p585 = scmp.eq.s32.totalorder %s584, 0
  %p586 = pneg %p585
  %588 = shalt.err (%p586)
  %s589 = scalar_lea.sflag [#allocation3], 45
  %590 = vsyncmov %s589
  %s591 = vpop.sfrf %590
  %p592 = scmp.eq.s32.totalorder %s591, 0
  %p593 = pneg %p592
  %595 = shalt.err (%p593)
  %s596 = scalar_lea.sflag [#allocation3], 46
  %597 = vsyncmov %s596
  %s598 = vpop.sfrf %597
  %p599 = scmp.eq.s32.totalorder %s598, 0
  %p600 = pneg %p599
  %602 = shalt.err (%p600)
  %s603 = scalar_lea.sflag [#allocation3], 47
  %604 = vsyncmov %s603
  %s605 = vpop.sfrf %604
  %p606 = scmp.eq.s32.totalorder %s605, 0
  %p607 = pneg %p606
  %609 = shalt.err (%p607)
  %s610 = scalar_lea.sflag [#allocation3], 48
  %611 = vsyncmov %s610
  %s612 = vpop.sfrf %611
  %p613 = scmp.eq.s32.totalorder %s612, 0
  %p614 = pneg %p613
  %616 = shalt.err (%p614)
  %s617 = scalar_lea.sflag [#allocation3], 49
  %618 = vsyncmov %s617
  %s619 = vpop.sfrf %618
  %p620 = scmp.eq.s32.totalorder %s619, 0
  %p621 = pneg %p620
  %623 = shalt.err (%p621)
  %s624 = scalar_lea.sflag [#allocation3], 50
  %625 = vsyncmov %s624
  %s626 = vpop.sfrf %625
  %p627 = scmp.eq.s32.totalorder %s626, 0
  %p628 = pneg %p627
  %630 = shalt.err (%p628)
  %s631 = scalar_lea.sflag [#allocation3], 51
  %632 = vsyncmov %s631
  %s633 = vpop.sfrf %632
  %p634 = scmp.eq.s32.totalorder %s633, 0
  %p635 = pneg %p634
  %637 = shalt.err (%p635)
  %s638 = scalar_lea.sflag [#allocation3], 52
  %639 = vsyncmov %s638
  %s640 = vpop.sfrf %639
  %p641 = scmp.eq.s32.totalorder %s640, 0
  %p642 = pneg %p641
  %644 = shalt.err (%p642)
  %s645 = scalar_lea.sflag [#allocation3], 53
  %646 = vsyncmov %s645
  %s647 = vpop.sfrf %646
  %p648 = scmp.eq.s32.totalorder %s647, 0
  %p649 = pneg %p648
  %651 = shalt.err (%p649)
  %s652 = scalar_lea.sflag [#allocation3], 54
  %653 = vsyncmov %s652
  %s654 = vpop.sfrf %653
  %p655 = scmp.eq.s32.totalorder %s654, 0
  %p656 = pneg %p655
  %658 = shalt.err (%p656)
  %s659 = scalar_lea.sflag [#allocation3], 55
  %660 = vsyncmov %s659
  %s661 = vpop.sfrf %660
  %p662 = scmp.eq.s32.totalorder %s661, 0
  %p663 = pneg %p662
  %665 = shalt.err (%p663)
  %s666 = scalar_lea.sflag [#allocation3], 56
  %667 = vsyncmov %s666
  %s668 = vpop.sfrf %667
  %p669 = scmp.eq.s32.totalorder %s668, 0
  %p670 = pneg %p669
  %672 = shalt.err (%p670)
  %s673 = scalar_lea.sflag [#allocation3], 57
  %674 = vsyncmov %s673
  %s675 = vpop.sfrf %674
  %p676 = scmp.eq.s32.totalorder %s675, 0
  %p677 = pneg %p676
  %679 = shalt.err (%p677)
  %s680 = scalar_lea.sflag [#allocation3], 58
  %681 = vsyncmov %s680
  %s682 = vpop.sfrf %681
  %p683 = scmp.eq.s32.totalorder %s682, 0
  %p684 = pneg %p683
  %686 = shalt.err (%p684)
  %s687 = scalar_lea.sflag [#allocation3], 59
  %688 = vsyncmov %s687
  %s689 = vpop.sfrf %688
  %p690 = scmp.eq.s32.totalorder %s689, 0
  %p691 = pneg %p690
  %693 = shalt.err (%p691)
  %s694 = scalar_lea.sflag [#allocation3], 60
  %695 = vsyncmov %s694
  %s696 = vpop.sfrf %695
  %p697 = scmp.eq.s32.totalorder %s696, 0
  %p698 = pneg %p697
  %700 = shalt.err (%p698)
  %s701 = scalar_lea.sflag [#allocation3], 61
  %702 = vsyncmov %s701
  %s703 = vpop.sfrf %702
  %p704 = scmp.eq.s32.totalorder %s703, 0
  %p705 = pneg %p704
  %707 = shalt.err (%p705)
  %s708 = scalar_lea.sflag [#allocation3], 62
  %709 = vsyncmov %s708
  %s710 = vpop.sfrf %709
  %p711 = scmp.eq.s32.totalorder %s710, 0
  %p712 = pneg %p711
  %714 = shalt.err (%p712)
  %s715 = scalar_lea.sflag [#allocation3], 63
  %716 = vsyncmov %s715
  %s717 = vpop.sfrf %716
  %p718 = scmp.eq.s32.totalorder %s717, 0
  %p719 = pneg %p718
  %721 = shalt.err (%p719)

</llo_original>
